<compile_context>
chip_gen: v7x
topology: tpu7x:2x2x1
jax: 0.10.0
libtpu: 0.0.40
codegen_flags: <defaults>
</compile_context>

<pallas_src>
import functools

import jax
import jax.numpy as jnp
from jax.experimental import pallas as pl
from jax.experimental.pallas import tpu as pltpu


def _vmem_capacity_bytes():
    """Physical VMEM per core; conservative fallback = v7x's 64 MiB."""
    try:
        return int(pltpu.get_tpu_info().vmem_capacity_bytes)
    except Exception:
        return 64 << 20


def _largest_divisor_leq(n, cap):
    best = 1
    for d in range(1, n + 1):
        if n % d == 0 and d <= cap:
            best = d
    return best


def _conv_stats_kernel(x_ref, w_ref, y_ref, stats_ref, acc_ref, *, K, Ho, stride):
    """Conv as K deep, M-batched lane-dense MXU matmuls + per-block BN partial sums.

    x_ref:     (Bn, Hp, Wp*Cin)      bf16 zero-padded input, (w, cin) folded into lanes
    w_ref:     (K, Wp*Cin, Wo*Cout)  bf16 banded (Toeplitz-over-W) weight, grid-invariant
    y_ref:     (Bn, Ho, Wo*Cout)     bf16 conv output (lane-dense)
    stats_ref: (2, Wo*Cout)          f32 [sum over rows ; sum of squares over rows]
    acc_ref:   (Bn*Ho, Wo*Cout)      f32 VMEM accumulator scratch
    """
    Bn = x_ref.shape[0]
    M = Bn * Ho
    WpC = x_ref.shape[-1]

    for kh in range(K):  # K is tiny and static; unrolled.
        sl = pl.ds(kh, Ho) if stride == 1 else pl.ds(kh, Ho, stride)
        # (Bn, Ho, WpC) row windows read straight from the ref, stacked to M rows so the
        # MXU sees one deep matmul per kh (M = Bn*Ho instead of Ho).
        xs = x_ref[:, sl, :].reshape(M, WpC)
        part = jnp.dot(xs, w_ref[kh], preferred_element_type=jnp.float32)
        if kh == 0:
            acc_ref[...] = part
        else:
            acc_ref[...] += part

    acc = acc_ref[...]
    y_ref[...] = acc.reshape(y_ref.shape).astype(y_ref.dtype)   # bf16 intermediate

    # BN partials as sublane (XLU) reductions — off the MXU, no concat copy.
    stats_ref[0:1, :] = jnp.sum(acc, axis=0, keepdims=True)
    stats_ref[1:2, :] = jnp.sum(acc * acc, axis=0, keepdims=True)


def _bn_relu_kernel(y_ref, scale_ref, shift_ref, o_ref):
    """Fused BN affine + ReLU over lane-dense (rows, Wo*Cout) tiles; bf16 in, f32 math."""
    y = y_ref[...].astype(jnp.float32)
    o_ref[...] = jnp.maximum(y * scale_ref[...] + shift_ref[...], 0.0).astype(o_ref.dtype)


def conv_block_forward(x_nchw, weight_oihw, gamma, beta, *, stride=1, eps=1e-5,
                       compute_dtype=jnp.bfloat16):
    """ConvBlock.forward: Conv2d(bias=False, pad=K//2) -> BatchNorm2d (train) -> ReLU."""
    N, Cin, H, W = x_nchw.shape
    Cout, _, K, _ = weight_oihw.shape
    pad = K // 2
    Hp, Wp = H + 2 * pad, W + 2 * pad
    Ho = (H + 2 * pad - K) // stride + 1
    Wo = (W + 2 * pad - K) // stride + 1
    WpC = Wp * Cin
    WoC = Wo * Cout
    itemsize = jnp.dtype(compute_dtype).itemsize
    out_dtype = x_nchw.dtype
    out_itemsize = jnp.dtype(out_dtype).itemsize

    vmem_budget = int(_vmem_capacity_bytes() * 0.9)   # ~10% headroom, per-generation

    # ---------------- wrapper-side layout ----------------
    # TODO(synk): fold padding into the kernel (halo DMA) and keep NHWC across chained
    # blocks to drop these extra full-activation HBM passes.
    x_nhwc = jnp.transpose(x_nchw, (0, 2, 3, 1))
    x_pad = jnp.pad(x_nhwc, ((0, 0), (pad, pad), (pad, pad), (0, 0)))
    x_fold = x_pad.reshape(N, Hp, WpC).astype(compute_dtype)          # lanes = (w, cin)

    # Banded weight: wt[kh, w*Cin+c, wo*Cout+co] = weight[co, c, kh, w - wo*stride]
    # (zero outside the band), built with the pad/tile/truncate/reshape Toeplitz trick
    # (no gather, no mask).  TODO(synk): precompute once per layer outside forward.
    w_kkco = jnp.transpose(weight_oihw, (2, 3, 1, 0))                 # (K, K, Cin, Cout)
    vpad = jnp.pad(w_kkco, ((0, 0), (0, Wp + stride - K), (0, 0), (0, 0)))
    band = jnp.broadcast_to(vpad[:, None], (K, Wo, Wp + stride, Cin, Cout))
    band = band.reshape(K, Wo * (Wp + stride), Cin, Cout)[:, :Wo * Wp]
    band = band.reshape(K, Wo, Wp, Cin, Cout)
    wt = jnp.transpose(band, (0, 2, 3, 1, 4)).reshape(K, WpC, WoC).astype(compute_dtype)

    # ---------------- M batching: Bn images per grid step ----------------
    # Target ~256 matmul rows (v6e/v7x MXU; >=128 covers v5e).  Bn must divide N so the
    # BN partials never see out-of-range rows.  (For small N*Ho this trades away grid
    # depth for v7x megacore; M-batching wins at these sizes.)
    bn_cap = max(1, 256 // max(Ho, 1))
    Bn = _largest_divisor_leq(N, bn_cap)

    def _ws_a(bn):                                        # per-step working set (bytes)
        return (2 * bn * Hp * WpC * itemsize              # x block, double-buffered
                + K * WpC * WoC * itemsize                # weight, single-buffered
                + 2 * bn * Ho * WoC * itemsize            # bf16 y block, double-buffered
                + 2 * 2 * WoC * 4                         # stats block
                + bn * Ho * WoC * 4)                      # f32 accumulator scratch

    while Bn > 1 and _ws_a(Bn) > vmem_budget // 2:
        Bn = _largest_divisor_leq(N, Bn - 1)
    G = N // Bn
    M = Bn * Ho

    vmem_a = int(min(max(2 * _ws_a(Bn) + (1 << 20), 4 << 20), vmem_budget))
    flops_a = 2 * N * K * Ho * WpC * WoC + 3 * N * Ho * WoC
    bytes_a = int(x_fold.size * itemsize + wt.size * itemsize
                  + N * Ho * WoC * itemsize + G * 2 * WoC * 4)

    # Grid-invariant weight: single-buffer it (halves its VMEM footprint — decisive on
    # v7x's 64 MiB).  Fall back gracefully if this Pallas version lacks pipeline_mode.
    try:
        w_spec = pl.BlockSpec((K, WpC, WoC), lambda i: (0, 0, 0),
                              pipeline_mode=pl.Buffered(1))
    except (AttributeError, TypeError):
        w_spec = pl.BlockSpec((K, WpC, WoC), lambda i: (0, 0, 0))

    conv_out, stats = pl.pallas_call(
        functools.partial(_conv_stats_kernel, K=K, Ho=Ho, stride=stride),
        out_shape=(jax.ShapeDtypeStruct((N, Ho, WoC), compute_dtype),   # bf16 intermediate
                   jax.ShapeDtypeStruct((G, 2, WoC), jnp.float32)),
        grid=(G,),
        in_specs=[pl.BlockSpec((Bn, Hp, WpC), lambda i: (i, 0, 0)),
                  w_spec],
        out_specs=(pl.BlockSpec((Bn, Ho, WoC), lambda i: (i, 0, 0)),
                   pl.BlockSpec((None, 2, WoC), lambda i: (i, 0, 0))),
        scratch_shapes=[pltpu.VMEM((M, WoC), jnp.float32)],
        compiler_params=pltpu.CompilerParams(
            dimension_semantics=("parallel",), vmem_limit_bytes=vmem_a),
        cost_estimate=pl.CostEstimate(flops=int(flops_a), transcendentals=0,
                                      bytes_accessed=bytes_a),
    )(x_fold, wt)

    # ---------------- global BN statistics (exact across all grid blocks) ----------------
    stats = stats.reshape(G, 2, Wo, Cout)
    count = N * Ho * Wo
    s1 = jnp.sum(stats[:, 0], axis=(0, 1))                            # (Cout,)
    s2 = jnp.sum(stats[:, 1], axis=(0, 1))
    mean = s1 / count
    # NOTE: E[x^2]-E[x]^2 in f32 can cancel when |mean| >> std; fine at these activation
    # scales (clamped at 0).  A centered two-pass reduction would make it exact.
    var = jnp.maximum(s2 / count - mean * mean, 0.0)                  # biased batch variance
    scale = gamma.astype(jnp.float32) * jax.lax.rsqrt(var + eps)
    shift = beta.astype(jnp.float32) - mean * scale
    scale_f = jnp.tile(scale, Wo).reshape(1, WoC)                     # (wo, co) lane layout
    shift_f = jnp.tile(shift, Wo).reshape(1, WoC)

    # ---------------- kernel B: BN affine + ReLU, VMEM-budgeted lane-dense row tiles ----------------
    rows = N * Ho
    conv2d = conv_out.reshape(rows, WoC)                              # bf16, free reshape
    bytes_per_row = WoC * (2 * itemsize + 2 * out_itemsize)           # dbl-buffered in + out
    fit_rows = max(32, ((vmem_budget // 2) // max(bytes_per_row, 1)) // 32 * 32)
    tile_rows = int(min(rows, fit_rows, 2048))
    vmem_b = int(min(max(2 * tile_rows * bytes_per_row + (1 << 20), 4 << 20), vmem_budget))

    out2d = pl.pallas_call(
        _bn_relu_kernel,
        out_shape=jax.ShapeDtypeStruct((rows, WoC), out_dtype),
        grid=(pl.cdiv(rows, tile_rows),),
        in_specs=[pl.BlockSpec((tile_rows, WoC), lambda i: (i, 0)),
                  pl.BlockSpec((1, WoC), lambda i: (0, 0)),
                  pl.BlockSpec((1, WoC), lambda i: (0, 0))],
        out_specs=pl.BlockSpec((tile_rows, WoC), lambda i: (i, 0)),
        compiler_params=pltpu.CompilerParams(
            dimension_semantics=("parallel",), vmem_limit_bytes=vmem_b),
        cost_estimate=pl.CostEstimate(
            flops=int(3 * rows * WoC), transcendentals=0,
            bytes_accessed=int(rows * WoC * (itemsize + out_itemsize))),
    )(conv2d, scale_f, shift_f)

    out_nhwc = out2d.reshape(N, Ho, Wo, Cout)
    return jnp.transpose(out_nhwc, (0, 3, 1, 2))                      # back to NCHW


def init_params(key, in_channels, out_channels, kernel_size, zero_bn=False):
    """Deterministic synthetic parameters matching ConvBlock.__init__ shapes."""
    weight = 0.1 * jax.random.normal(
        key, (out_channels, in_channels, kernel_size, kernel_size), jnp.float32)
    gamma = (1e-5 if zero_bn else 1.0) * jnp.ones((out_channels,), jnp.float32)
    beta = jnp.zeros((out_channels,), jnp.float32)
    return weight, gamma, beta


if __name__ == "__main__":
    N, Cin, Cout, H, W, K = 2, 4, 8, 16, 16, 3
    stride = 1

    key = jax.random.PRNGKey(0)
    kx, kw = jax.random.split(key)
    x = jax.random.normal(kx, (N, Cin, H, W), jnp.float32)
    weight, gamma, beta = init_params(kw, Cin, Cout, K, zero_bn=False)

    out = conv_block_forward(x, weight, gamma, beta, stride=stride)
    out = jax.block_until_ready(out)

    # Pure-JAX reference (bf16 matmul operands, f32 accumulation / intermediate):
    # conv -> training-mode BN (biased batch var) -> ReLU.
    pad = K // 2
    ref_conv = jax.lax.conv_general_dilated(
        x.astype(jnp.bfloat16), weight.astype(jnp.bfloat16), (stride, stride),
        ((pad, pad), (pad, pad)), dimension_numbers=("NCHW", "OIHW", "NCHW"),
        preferred_element_type=jnp.float32)
    ref_mean = ref_conv.mean(axis=(0, 2, 3), keepdims=True)
    ref_var = ref_conv.var(axis=(0, 2, 3), keepdims=True)
    ref = jnp.maximum(
        (ref_conv - ref_mean) * jax.lax.rsqrt(ref_var + 1e-5) * gamma.reshape(1, -1, 1, 1)
        + beta.reshape(1, -1, 1, 1), 0.0)

    assert out.shape == ref.shape, (out.shape, ref.shape)
    # The kernel stores the conv intermediate in bf16 (per perf guidance); the resulting
    # rounding (~half-ulp of the conv value / batch std) bounds the error vs the f32
    # reference at roughly 1.5e-2 for these activation scales.
    max_err = float(jnp.max(jnp.abs(out - ref)))
    mean_err = float(jnp.mean(jnp.abs(out - ref)))
    assert max_err < 3e-2, max_err
    assert mean_err < 5e-3, mean_err
    print("KERNEL_OK")
</pallas_src>

<mosaic_0001>
module attributes {stable_mosaic.version = 11 : i64} {
  func.func @_conv_stats_kernel(%arg0: i32, %arg1: memref<2x18x72xbf16, #tpu.memory_space<vmem>>, %arg2: memref<3x72x128xbf16, #tpu.memory_space<vmem>>, %arg3: memref<2x16x128xbf16, #tpu.memory_space<vmem>>, %arg4: memref<1x2x128xf32, #tpu.memory_space<vmem>>, %arg5: memref<32x128xf32, #tpu.memory_space<vmem>>) attributes {dimension_semantics = [#tpu.dimension_semantics<parallel>], iteration_bounds = array<i64: 1>, scalar_prefetch = 0 : i64, scratch_operands = 1 : i64, tpu.core_type = #tpu.core_type<tc>, window_params = [{transform_indices = @transform_0, window_bounds = array<i64: 2, 18, 72>}, {pipeline_mode = #tpu.pipeline_mode<synchronous>, transform_indices = @transform_1, window_bounds = array<i64: 3, 72, 128>}, {transform_indices = @transform_2, window_bounds = array<i64: 2, 16, 128>}, {transform_indices = @transform_3, window_bounds = array<i64: 1, 2, 128>}]} {
    %c0 = arith.constant 0 : index
    %c0_0 = arith.constant 0 : index
    %c0_1 = arith.constant 0 : index
    %0 = vector.load %arg1[%c0, %c0_0, %c0_1] : memref<2x18x72xbf16, #tpu.memory_space<vmem>>, vector<2x16x72xbf16>
    %1 = vector.shape_cast %0 : vector<2x16x72xbf16> to vector<32x72xbf16>
    %c0_2 = arith.constant 0 : index
    %c0_3 = arith.constant 0 : index
    %c0_4 = arith.constant 0 : index
    %2 = vector.load %arg2[%c0_2, %c0_3, %c0_4] : memref<3x72x128xbf16, #tpu.memory_space<vmem>>, vector<1x72x128xbf16>
    %3 = vector.shape_cast %2 : vector<1x72x128xbf16> to vector<72x128xbf16>
    %cst = arith.constant dense<0.000000e+00> : vector<32x128xf32>
    %4 = tpu.matmul %1, %3, %cst {dimension_numbers = #tpu.dot_dimension_numbers<[1], [0], [0], [1], [0, 0, 1, 1], [], []>} : vector<32x72xbf16>, vector<72x128xbf16>, vector<32x128xf32> -> vector<32x128xf32>
    %c0_5 = arith.constant 0 : index
    %c0_6 = arith.constant 0 : index
    %5 = vector.load %arg5[%c0_5, %c0_6] : memref<32x128xf32, #tpu.memory_space<vmem>>, vector<32x128xf32>
    tpu.vector_store %arg5[%c0_5, %c0_6], %4 {strides = array<i32>} : memref<32x128xf32, #tpu.memory_space<vmem>>, vector<32x128xf32>,
    %c0_7 = arith.constant 0 : index
    %c1 = arith.constant 1 : index
    %c0_8 = arith.constant 0 : index
    %6 = vector.load %arg1[%c0_7, %c1, %c0_8] : memref<2x18x72xbf16, #tpu.memory_space<vmem>>, vector<2x16x72xbf16>
    %7 = vector.shape_cast %6 : vector<2x16x72xbf16> to vector<32x72xbf16>
    %c1_9 = arith.constant 1 : index
    %c0_10 = arith.constant 0 : index
    %c0_11 = arith.constant 0 : index
    %8 = vector.load %arg2[%c1_9, %c0_10, %c0_11] : memref<3x72x128xbf16, #tpu.memory_space<vmem>>, vector<1x72x128xbf16>
    %9 = vector.shape_cast %8 : vector<1x72x128xbf16> to vector<72x128xbf16>
    %cst_12 = arith.constant dense<0.000000e+00> : vector<32x128xf32>
    %10 = tpu.matmul %7, %9, %cst_12 {dimension_numbers = #tpu.dot_dimension_numbers<[1], [0], [0], [1], [0, 0, 1, 1], [], []>} : vector<32x72xbf16>, vector<72x128xbf16>, vector<32x128xf32> -> vector<32x128xf32>
    %c0_13 = arith.constant 0 : index
    %c0_14 = arith.constant 0 : index
    %11 = vector.load %arg5[%c0_13, %c0_14] : memref<32x128xf32, #tpu.memory_space<vmem>>, vector<32x128xf32>
    %12 = arith.addf %11, %10 : vector<32x128xf32>
    %c0_15 = arith.constant 0 : index
    %c0_16 = arith.constant 0 : index
    %13 = vector.load %arg5[%c0_15, %c0_16] : memref<32x128xf32, #tpu.memory_space<vmem>>, vector<32x128xf32>
    tpu.vector_store %arg5[%c0_15, %c0_16], %12 {strides = array<i32>} : memref<32x128xf32, #tpu.memory_space<vmem>>, vector<32x128xf32>,
    %c0_17 = arith.constant 0 : index
    %c2 = arith.constant 2 : index
    %c0_18 = arith.constant 0 : index
    %14 = vector.load %arg1[%c0_17, %c2, %c0_18] : memref<2x18x72xbf16, #tpu.memory_space<vmem>>, vector<2x16x72xbf16>
    %15 = vector.shape_cast %14 : vector<2x16x72xbf16> to vector<32x72xbf16>
    %c2_19 = arith.constant 2 : index
    %c0_20 = arith.constant 0 : index
    %c0_21 = arith.constant 0 : index
    %16 = vector.load %arg2[%c2_19, %c0_20, %c0_21] : memref<3x72x128xbf16, #tpu.memory_space<vmem>>, vector<1x72x128xbf16>
    %17 = vector.shape_cast %16 : vector<1x72x128xbf16> to vector<72x128xbf16>
    %cst_22 = arith.constant dense<0.000000e+00> : vector<32x128xf32>
    %18 = tpu.matmul %15, %17, %cst_22 {dimension_numbers = #tpu.dot_dimension_numbers<[1], [0], [0], [1], [0, 0, 1, 1], [], []>} : vector<32x72xbf16>, vector<72x128xbf16>, vector<32x128xf32> -> vector<32x128xf32>
    %c0_23 = arith.constant 0 : index
    %c0_24 = arith.constant 0 : index
    %19 = vector.load %arg5[%c0_23, %c0_24] : memref<32x128xf32, #tpu.memory_space<vmem>>, vector<32x128xf32>
    %20 = arith.addf %19, %18 : vector<32x128xf32>
    %c0_25 = arith.constant 0 : index
    %c0_26 = arith.constant 0 : index
    %21 = vector.load %arg5[%c0_25, %c0_26] : memref<32x128xf32, #tpu.memory_space<vmem>>, vector<32x128xf32>
    tpu.vector_store %arg5[%c0_25, %c0_26], %20 {strides = array<i32>} : memref<32x128xf32, #tpu.memory_space<vmem>>, vector<32x128xf32>,
    %c0_27 = arith.constant 0 : index
    %c0_28 = arith.constant 0 : index
    %22 = vector.load %arg5[%c0_27, %c0_28] : memref<32x128xf32, #tpu.memory_space<vmem>>, vector<32x128xf32>
    %23 = vector.shape_cast %22 : vector<32x128xf32> to vector<2x16x128xf32>
    %24 = arith.truncf %23 : vector<2x16x128xf32> to vector<2x16x128xbf16>
    %c0_29 = arith.constant 0 : index
    %c0_30 = arith.constant 0 : index
    %c0_31 = arith.constant 0 : index
    %25 = vector.load %arg3[%c0_29, %c0_30, %c0_31] : memref<2x16x128xbf16, #tpu.memory_space<vmem>>, vector<2x16x128xbf16>
    tpu.vector_store %arg3[%c0_29, %c0_30, %c0_31], %24 {strides = array<i32>} : memref<2x16x128xbf16, #tpu.memory_space<vmem>>, vector<2x16x128xbf16>,
    %cst_32 = arith.constant dense<0.000000e+00> : vector<128xf32>
    %26 = vector.multi_reduction <add>, %22, %cst_32 [0] : vector<32x128xf32> to vector<128xf32>
    %27 = vector.shape_cast %26 : vector<128xf32> to vector<1x128xf32>
    %c0_33 = arith.constant 0 : index
    %c0_34 = arith.constant 0 : index
    %c0_35 = arith.constant 0 : index
    %28 = vector.load %arg4[%c0_33, %c0_34, %c0_35] : memref<1x2x128xf32, #tpu.memory_space<vmem>>, vector<1x1x128xf32>
    %29 = vector.shape_cast %28 : vector<1x1x128xf32> to vector<1x128xf32>
    %30 = vector.shape_cast %27 : vector<1x128xf32> to vector<1x1x128xf32>
    tpu.vector_store %arg4[%c0_33, %c0_34, %c0_35], %30 {strides = array<i32>} : memref<1x2x128xf32, #tpu.memory_space<vmem>>, vector<1x1x128xf32>,
    %31 = arith.mulf %22, %22 : vector<32x128xf32>
    %cst_36 = arith.constant dense<0.000000e+00> : vector<128xf32>
    %32 = vector.multi_reduction <add>, %31, %cst_36 [0] : vector<32x128xf32> to vector<128xf32>
    %33 = vector.shape_cast %32 : vector<128xf32> to vector<1x128xf32>
    %c0_37 = arith.constant 0 : index
    %c1_38 = arith.constant 1 : index
    %c0_39 = arith.constant 0 : index
    %34 = vector.load %arg4[%c0_37, %c1_38, %c0_39] : memref<1x2x128xf32, #tpu.memory_space<vmem>>, vector<1x1x128xf32>
    %35 = vector.shape_cast %34 : vector<1x1x128xf32> to vector<1x128xf32>
    %36 = vector.shape_cast %33 : vector<1x128xf32> to vector<1x1x128xf32>
    tpu.vector_store %arg4[%c0_37, %c1_38, %c0_39], %36 {strides = array<i32>} : memref<1x2x128xf32, #tpu.memory_space<vmem>>, vector<1x1x128xf32>,
    return
  }
  func.func @transform_0(%arg0: i32) -> (i32, i32, i32) {
    %c0_i32 = arith.constant 0 : i32
    %c0_i32_0 = arith.constant 0 : i32
    %c0_i32_1 = arith.constant 0 : i32
    return %arg0, %c0_i32, %c0_i32_0 : i32, i32, i32
  }
  func.func @transform_1(%arg0: i32) -> (i32, i32, i32) {
    %c0_i32 = arith.constant 0 : i32
    %c0_i32_0 = arith.constant 0 : i32
    %c0_i32_1 = arith.constant 0 : i32
    %c0_i32_2 = arith.constant 0 : i32
    return %c0_i32, %c0_i32_0, %c0_i32_1 : i32, i32, i32
  }
  func.func @transform_2(%arg0: i32) -> (i32, i32, i32) {
    %c0_i32 = arith.constant 0 : i32
    %c0_i32_0 = arith.constant 0 : i32
    %c0_i32_1 = arith.constant 0 : i32
    return %arg0, %c0_i32, %c0_i32_0 : i32, i32, i32
  }
  func.func @transform_3(%arg0: i32) -> (i32, i32, i32) {
    %c0_i32 = arith.constant 0 : i32
    %c0_i32_0 = arith.constant 0 : i32
    %c0_i32_1 = arith.constant 0 : i32
    return %arg0, %c0_i32, %c0_i32_0 : i32, i32, i32
  }
}

</mosaic_0001>

<llo_original>
// kernel: tpu_custom_call.1
$region0: #{tpu_custom_call.1}
  #allocation0 [shape = 'u32[]', space=smem, size = 0x4, offset = 0x4, fixed_abs, tag = 'smem constant byte address 0x4 - core index']
  #allocation1 [shape = 'u32[144,128]{1,0:T(1,128)}', space=vmem, size = 0x12000, scoped, tag = 'internal scratch']
  #allocation2 [shape = 'f32[32,128]{1,0:T(8,128)}', space=vmem, size = 0x4000, scoped, tag = 'scratch operand']
  %s0 = inlined_call_operand.vmem [shape: bf16[2,18,72], index: 0, kind: input, shape index: {}]
  %s1 = inlined_call_operand.hbm [shape: bf16[3,72,128], index: 1, kind: input, shape index: {}]
  %s2 = inlined_call_operand.hbm [shape: bf16[2,16,128], index: 2, kind: output, shape index: {0}]
  %s3 = inlined_call_operand.hbm [shape: f32[1,2,128], index: 3, kind: output, shape index: {1}]
  %4 = xla_tuple %s2, %s3
  %s5 = sld [smem:[#allocation0]]
  $region30: #{tpu_custom_call.1} parent=0
    _
  %s7 = ssub.s32 1, %s5
  %s8 = scalar_select 0, %s7, %s5
  $region1: #{tpu_custom_call.1} parent=0
    #allocation3 [shape = 'u8[55296]{0}', space=vmem, size = 0xd800, scoped, tag = 'input window, operand 1, single buffered']
    #allocation4 [shape = 's32[1]{0}', space=sflag, size = 0x4, scoped, tag = 'scoped memory for tpu_custom_call.1']
    #allocation5 [shape = 's32[1]{0}', space=sflag, size = 0x4, scoped, tag = 'scoped memory for tpu_custom_call.1']
    #allocation6 [shape = 'u8[8192]{0}', space=vmem, size = 0x2000, scoped, tag = 'output window, operand 0, single buffered']
    #allocation7 [shape = 'u8[1024]{0}', space=vmem, size = 0x400, scoped, tag = 'output window, operand 1, single buffered']
    #allocation8 [shape = 's32[1]{0}', space=sflag, size = 0x4, scoped, tag = 'scoped memory for tpu_custom_call.1']
    %9 = vsyncpa [#allocation4], 0
    %10 = vsyncpa [#allocation5], 0
    %11 = vsyncpa [#allocation8], 0
    // Predicated region
    $region2: #{tpu_custom_call.1} parent=1 // pred_check
      _
    $region3: #{tpu_custom_call.1} parent=1 // pred_check_branch
      %13 = sbr.rel (0) target = $region5
    $region4: #{tpu_custom_call.1} parent=1 // pred_region
      _
    $region5: #{tpu_custom_call.1} parent=1 // pred_fallthru
      _
    // Predicated region
    $region6: #{tpu_custom_call.1} parent=1 // pred_check
      _
    $region7: #{tpu_custom_call.1} parent=1 // pred_check_branch
      %15 = sbr.rel (0) target = $region9
    $region8: #{tpu_custom_call.1} parent=1 // pred_region
      %s17 = ssub.s32 1728, 1728
      %18 = vsyncadd [#allocation4], %s17
      %s19 = sshll.u32 [#allocation3], 4
      %s20 = int_to_ptr.vmem [resolvable:$true] %s19
      %25 = dma.hbm_to_vmem [thread:$0]  %s1, 1728, %s20, [#allocation4], 64, 64, 4
    $region9: #{tpu_custom_call.1} parent=1 // pred_fallthru
      _
    // Predicated region
    $region10: #{tpu_custom_call.1} parent=1 // pred_check
      _
    $region11: #{tpu_custom_call.1} parent=1 // pred_check_branch
      %27 = sbr.rel (0) target = $region13
    $region12: #{tpu_custom_call.1} parent=1 // pred_region
      %28 = dma.done [#allocation4], 1728
    $region13: #{tpu_custom_call.1} parent=1 // pred_fallthru
      _
    %v30 = vld [vmem:[%s0] sm:$0xf]
    %v31 = vld [vmem:[%s0 + $0x4] sm:$0xf]
    %v32 = vld [vmem:[%s0 + $0xc] sm:$0xf]
    %v33 = vld [vmem:[%s0 + $0x10] sm:$0xf]
    %v34 = vld [vmem:[#allocation3] sm:$0xf]
    %v35 = vld [vmem:[#allocation3 + $0x4] sm:$0xf]
    %v36 = vld [vmem:[#allocation3 + $0x8] sm:$0xf]
    %v37 = vld [vmem:[#allocation3 + $0xc] sm:$0xf]
    %v38 = vld [vmem:[#allocation3 + $0x10] sm:$0xf]
    %v39 = vld [vmem:[#allocation3 + $0x14] sm:$0xf]
    %v40 = vld [vmem:[#allocation3 + $0x18] sm:$0xf]
    %v41 = vld [vmem:[#allocation3 + $0x1c] sm:$0xf]
    %v42 = vld [vmem:[#allocation3 + $0x20] sm:$0xf]
    %v47 = vunpack.c.l.b16 %v30
    %v48 = vunpack.c.l.b16 %v31
    %v49 = vunpack.c.l.b16 %v32
    %v50 = vunpack.c.l.b16 %v33
    %v51 = vpack.c.b16 %v48, %v47
    %v52 = vpack.c.b16 %v50, %v49
    %v62 = vunpack.c.l.b16 %v34
    %v63 = vunpack.c.l.b16 %v35
    %v64 = vunpack.c.l.b16 %v36
    %v65 = vunpack.c.l.b16 %v37
    %v66 = vunpack.c.l.b16 %v38
    %v67 = vunpack.c.l.b16 %v39
    %v68 = vunpack.c.l.b16 %v40
    %v69 = vunpack.c.l.b16 %v41
    %v70 = vunpack.c.l.b16 %v42
    %v71 = vpack.c.b16 %v63, %v62
    %v72 = vpack.c.b16 %v65, %v64
    %v73 = vpack.c.b16 %v67, %v66
    %v74 = vpack.c.b16 %v69, %v68
    %v75 = vpack.c.b16 %v70, %v70
    %vm80 = vcmask 588800
    %v82 = vsel %vm80, %v51, 0
    %v85 = vsel %vm80, %v52, 0
    %vm87 = vcmask 1043456
    %v89 = vsel %vm87, %v75, 0
    %91 = vmatprep.subr.bf16.mxu0 0
    %92 = vmatpush1.bf16.msra.mxu0 %v71
    %93 = vmatprep.subr.bf16.mxu0 0
    %94 = vmatpush1.bf16.msra.mxu0 %v72
    %95 = vmatprep.subr.bf16.mxu0 0
    %96 = vmatpush1.bf16.msra.mxu0 %v73
    %97 = vmatprep.subr.bf16.mxu0 0
    %98 = vmatpush1.bf16.msra.mxu0 %v74
    %99 = vmatprep.subr.bf16.mxu0 0
    %100 = vmatpush1.bf16.msra.mxu0 %v89
    %101 = vmatprep.subr.bf16.mxu0 0
    %102 = vmatpush1.bf16.msra.mxu0 0
    %103 = vmatprep.subr.bf16.mxu0 0
    %104 = vmatpush1.bf16.msra.mxu0 0
    %105 = vmatprep.subr.bf16.mxu0 0
    %106 = vmatpush1.bf16.msra.mxu0 0
    %107 = vmatprep.subr.bf16.mxu0 0
    %108 = vmatpush1.bf16.msra.mxu0 0
    %109 = vmatprep.subr.bf16.mxu0 0
    %110 = vmatpush1.bf16.msra.mxu0 0
    %111 = vmatprep.subr.bf16.mxu0 0
    %112 = vmatpush1.bf16.msra.mxu0 0
    %113 = vmatprep.subr.bf16.mxu0 0
    %114 = vmatpush1.bf16.msra.mxu0 0
    %115 = vmatprep.subr.bf16.mxu0 0
    %116 = vmatpush1.bf16.msra.mxu0 0
    %117 = vmatprep.subr.bf16.mxu0 0
    %118 = vmatpush1.bf16.msra.mxu0 0
    %119 = vmatprep.subr.bf16.mxu0 0
    %120 = vmatpush1.bf16.msra.mxu0 0
    %121 = vmatprep.subr.bf16.mxu0 0
    %122 = vmatpush1.bf16.msra.mxu0 0
    %123 = vmatprep.mubr.bf16.mxu0 0
    %124 = vmatmul.mubr.bf16.gmra.mrb[0].mxu0 %v82
    %v125 = vpop.f32.mrb[0].mxu0
    %v126 = vadd.f32 0.0, %v125
    %v127 = vpop.f32.mrb[0].mxu0
    %v128 = vpop.f32.mrb[0].mxu0
    %v129 = vadd.f32 0.0, %v128
    %v130 = vpop.f32.mrb[0].mxu0
    %131 = vmatprep.mubr.bf16.mxu0 0
    %132 = vmatmul.mubr.bf16.gmra.mrb[0].mxu0 %v85
    %v133 = vpop.f32.mrb[0].mxu0
    %v134 = vadd.f32 0.0, %v133
    %v135 = vpop.f32.mrb[0].mxu0
    %v136 = vpop.f32.mrb[0].mxu0
    %v137 = vadd.f32 0.0, %v136
    %v138 = vpop.f32.mrb[0].mxu0
    %139 = vdwg.mxu0
    %140 = vst [vmem:[#allocation2] sm:$0xff] %v126
    %141 = vst [vmem:[#allocation2 + $0x8] sm:$0xff] %v129
    %142 = vst [vmem:[#allocation2 + $0x10] sm:$0xff] %v134
    %143 = vst [vmem:[#allocation2 + $0x18] sm:$0xff] %v137
    %v144 = vld [vmem:[%s0] sm:$0xf]
    %v145 = vld [vmem:[%s0 + $0x4] sm:$0xf]
    %v146 = vld [vmem:[%s0 + $0x8] sm:$0x1]
    %v147 = vld [vmem:[%s0 + $0xc] sm:$0xf]
    %v148 = vld [vmem:[%s0 + $0x10] sm:$0xf]
    %v149 = vld [vmem:[%s0 + $0x14] sm:$0x1]
    %vm150 = vsmask.f32 3328
    %vm151 = vsmask.f32 7440
    %vm152 = vmor %vm150, %vm151
    %v154 = vshrl.u32 %v144, 16
    %v156 = vrot.slane %v154, 4
    %v157 = vshll.u32 %v144, 16
    %v159 = vrot.slane %v157, 5
    %v160 = vor.u32 %v156, %v159
    %v161 = vrot.slane %v160, 4
    %v163 = vshll.u32 %v145, 16
    %v165 = vrot.slane %v163, 5
    %v166 = vsel %vm152, %v161, %v165
    %v167 = vshrl.u32 %v145, 16
    %v169 = vrot.slane %v167, 4
    %v170 = vor.u32 %v169, %v165
    %v171 = vrot.slane %v170, 4
    %v173 = vshll.u32 %v146, 16
    %v175 = vrot.slane %v173, 5
    %v176 = vsel %vm152, %v171, %v175
    %v178 = vshrl.u32 %v147, 16
    %v180 = vrot.slane %v178, 4
    %v181 = vshll.u32 %v147, 16
    %v183 = vrot.slane %v181, 5
    %v184 = vor.u32 %v180, %v183
    %v185 = vrot.slane %v184, 4
    %v187 = vshll.u32 %v148, 16
    %v189 = vrot.slane %v187, 5
    %v190 = vsel %vm152, %v185, %v189
    %v191 = vshrl.u32 %v148, 16
    %v193 = vrot.slane %v191, 4
    %v194 = vor.u32 %v193, %v189
    %v195 = vrot.slane %v194, 4
    %v197 = vshll.u32 %v149, 16
    %v199 = vrot.slane %v197, 5
    %v200 = vsel %vm152, %v195, %v199
    %s201 = scalar_lea.vmem [#allocation3], 36
    %v202 = vld [vmem:[%s201] sm:$0xf]
    %v203 = vld [vmem:[%s201 + $0x4] sm:$0xf]
    %v204 = vld [vmem:[%s201 + $0x8] sm:$0xf]
    %v205 = vld [vmem:[%s201 + $0xc] sm:$0xf]
    %v206 = vld [vmem:[%s201 + $0x10] sm:$0xf]
    %v207 = vld [vmem:[%s201 + $0x14] sm:$0xf]
    %v208 = vld [vmem:[%s201 + $0x18] sm:$0xf]
    %v209 = vld [vmem:[%s201 + $0x1c] sm:$0xf]
    %v210 = vld [vmem:[%s201 + $0x20] sm:$0xf]
    %v211 = vunpack.c.l.b16 %v166
    %v212 = vunpack.c.l.b16 %v176
    %v213 = vunpack.c.l.b16 %v190
    %v214 = vunpack.c.l.b16 %v200
    %v215 = vpack.c.b16 %v212, %v211
    %v216 = vpack.c.b16 %v214, %v213
    %v226 = vunpack.c.l.b16 %v202
    %v227 = vunpack.c.l.b16 %v203
    %v228 = vunpack.c.l.b16 %v204
    %v229 = vunpack.c.l.b16 %v205
    %v230 = vunpack.c.l.b16 %v206
    %v231 = vunpack.c.l.b16 %v207
    %v232 = vunpack.c.l.b16 %v208
    %v233 = vunpack.c.l.b16 %v209
    %v234 = vunpack.c.l.b16 %v210
    %v235 = vpack.c.b16 %v227, %v226
    %v236 = vpack.c.b16 %v229, %v228
    %v237 = vpack.c.b16 %v231, %v230
    %v238 = vpack.c.b16 %v233, %v232
    %v239 = vpack.c.b16 %v234, %v234
    %v245 = vsel %vm80, %v215, 0
    %v248 = vsel %vm80, %v216, 0
    %v251 = vsel %vm87, %v239, 0
    %253 = vmatprep.subr.bf16.mxu0 0
    %254 = vmatpush1.bf16.msra.mxu0 %v235
    %255 = vmatprep.subr.bf16.mxu0 0
    %256 = vmatpush1.bf16.msra.mxu0 %v236
    %257 = vmatprep.subr.bf16.mxu0 0
    %258 = vmatpush1.bf16.msra.mxu0 %v237
    %259 = vmatprep.subr.bf16.mxu0 0
    %260 = vmatpush1.bf16.msra.mxu0 %v238
    %261 = vmatprep.subr.bf16.mxu0 0
    %262 = vmatpush1.bf16.msra.mxu0 %v251
    %263 = vmatprep.subr.bf16.mxu0 0
    %264 = vmatpush1.bf16.msra.mxu0 0
    %265 = vmatprep.subr.bf16.mxu0 0
    %266 = vmatpush1.bf16.msra.mxu0 0
    %267 = vmatprep.subr.bf16.mxu0 0
    %268 = vmatpush1.bf16.msra.mxu0 0
    %269 = vmatprep.subr.bf16.mxu0 0
    %270 = vmatpush1.bf16.msra.mxu0 0
    %271 = vmatprep.subr.bf16.mxu0 0
    %272 = vmatpush1.bf16.msra.mxu0 0
    %273 = vmatprep.subr.bf16.mxu0 0
    %274 = vmatpush1.bf16.msra.mxu0 0
    %275 = vmatprep.subr.bf16.mxu0 0
    %276 = vmatpush1.bf16.msra.mxu0 0
    %277 = vmatprep.subr.bf16.mxu0 0
    %278 = vmatpush1.bf16.msra.mxu0 0
    %279 = vmatprep.subr.bf16.mxu0 0
    %280 = vmatpush1.bf16.msra.mxu0 0
    %281 = vmatprep.subr.bf16.mxu0 0
    %282 = vmatpush1.bf16.msra.mxu0 0
    %283 = vmatprep.subr.bf16.mxu0 0
    %284 = vmatpush1.bf16.msra.mxu0 0
    %285 = vmatprep.mubr.bf16.mxu0 0
    %286 = vmatmul.mubr.bf16.gmra.mrb[0].mxu0 %v245
    %v287 = vpop.f32.mrb[0].mxu0
    %v288 = vadd.f32 0.0, %v287
    %v289 = vpop.f32.mrb[0].mxu0
    %v290 = vpop.f32.mrb[0].mxu0
    %v291 = vadd.f32 0.0, %v290
    %v292 = vpop.f32.mrb[0].mxu0
    %293 = vmatprep.mubr.bf16.mxu0 0
    %294 = vmatmul.mubr.bf16.gmra.mrb[0].mxu0 %v248
    %v295 = vpop.f32.mrb[0].mxu0
    %v296 = vadd.f32 0.0, %v295
    %v297 = vpop.f32.mrb[0].mxu0
    %v298 = vpop.f32.mrb[0].mxu0
    %v299 = vadd.f32 0.0, %v298
    %v300 = vpop.f32.mrb[0].mxu0
    %301 = vdwg.mxu0
    %v302 = vld [vmem:[#allocation2] sm:$0xff]
    %v303 = vld [vmem:[#allocation2 + $0x8] sm:$0xff]
    %v304 = vld [vmem:[#allocation2 + $0x10] sm:$0xff]
    %v305 = vld [vmem:[#allocation2 + $0x18] sm:$0xff]
    %v306 = vadd.f32 %v302, %v288
    %v307 = vadd.f32 %v303, %v291
    %v308 = vadd.f32 %v304, %v296
    %v309 = vadd.f32 %v305, %v299
    %310 = vst [vmem:[#allocation2] sm:$0xff] %v306
    %311 = vst [vmem:[#allocation2 + $0x8] sm:$0xff] %v307
    %312 = vst [vmem:[#allocation2 + $0x10] sm:$0xff] %v308
    %313 = vst [vmem:[#allocation2 + $0x18] sm:$0xff] %v309
    %v314 = vld [vmem:[%s0] sm:$0xe]
    %v315 = vld [vmem:[%s0 + $0x4] sm:$0xf]
    %v316 = vld [vmem:[%s0 + $0x8] sm:$0x1]
    %v317 = vld [vmem:[%s0 + $0xc] sm:$0xe]
    %v318 = vld [vmem:[%s0 + $0x10] sm:$0xf]
    %v319 = vld [vmem:[%s0 + $0x14] sm:$0x1]
    %vm326 = vcmask 1042432
    %vm327 = vcmask 1046532
    %vm328 = vmor %vm326, %vm327
    %v329 = vrot.slane %v314, 5
    %v330 = vrot.slane %v329, 4
    %v331 = vrot.slane %v315, 5
    %v332 = vsel %vm328, %v330, %v331
    %v333 = vrot.slane %v331, 4
    %v334 = vrot.slane %v316, 5
    %v335 = vsel %vm328, %v333, %v334
    %v336 = vrot.slane %v317, 5
    %v337 = vrot.slane %v336, 4
    %v338 = vrot.slane %v318, 5
    %v339 = vsel %vm328, %v337, %v338
    %v340 = vrot.slane %v338, 4
    %v341 = vrot.slane %v319, 5
    %v342 = vsel %vm328, %v340, %v341
    %s343 = scalar_lea.vmem [#allocation3], 72
    %v344 = vld [vmem:[%s343] sm:$0xf]
    %v345 = vld [vmem:[%s343 + $0x4] sm:$0xf]
    %v346 = vld [vmem:[%s343 + $0x8] sm:$0xf]
    %v347 = vld [vmem:[%s343 + $0xc] sm:$0xf]
    %v348 = vld [vmem:[%s343 + $0x10] sm:$0xf]
    %v349 = vld [vmem:[%s343 + $0x14] sm:$0xf]
    %v350 = vld [vmem:[%s343 + $0x18] sm:$0xf]
    %v351 = vld [vmem:[%s343 + $0x1c] sm:$0xf]
    %v352 = vld [vmem:[%s343 + $0x20] sm:$0xf]
    %v353 = vunpack.c.l.b16 %v332
    %v354 = vunpack.c.l.b16 %v335
    %v355 = vunpack.c.l.b16 %v339
    %v356 = vunpack.c.l.b16 %v342
    %v357 = vpack.c.b16 %v354, %v353
    %v358 = vpack.c.b16 %v356, %v355
    %v368 = vunpack.c.l.b16 %v344
    %v369 = vunpack.c.l.b16 %v345
    %v370 = vunpack.c.l.b16 %v346
    %v371 = vunpack.c.l.b16 %v347
    %v372 = vunpack.c.l.b16 %v348
    %v373 = vunpack.c.l.b16 %v349
    %v374 = vunpack.c.l.b16 %v350
    %v375 = vunpack.c.l.b16 %v351
    %v376 = vunpack.c.l.b16 %v352
    %v377 = vpack.c.b16 %v369, %v368
    %v378 = vpack.c.b16 %v371, %v370
    %v379 = vpack.c.b16 %v373, %v372
    %v380 = vpack.c.b16 %v375, %v374
    %v381 = vpack.c.b16 %v376, %v376
    %v387 = vsel %vm80, %v357, 0
    %v390 = vsel %vm80, %v358, 0
    %v393 = vsel %vm87, %v381, 0
    %395 = vmatprep.subr.bf16.mxu0 0
    %396 = vmatpush1.bf16.msra.mxu0 %v377
    %397 = vmatprep.subr.bf16.mxu0 0
    %398 = vmatpush1.bf16.msra.mxu0 %v378
    %399 = vmatprep.subr.bf16.mxu0 0
    %400 = vmatpush1.bf16.msra.mxu0 %v379
    %401 = vmatprep.subr.bf16.mxu0 0
    %402 = vmatpush1.bf16.msra.mxu0 %v380
    %403 = vmatprep.subr.bf16.mxu0 0
    %404 = vmatpush1.bf16.msra.mxu0 %v393
    %405 = vmatprep.subr.bf16.mxu0 0
    %406 = vmatpush1.bf16.msra.mxu0 0
    %407 = vmatprep.subr.bf16.mxu0 0
    %408 = vmatpush1.bf16.msra.mxu0 0
    %409 = vmatprep.subr.bf16.mxu0 0
    %410 = vmatpush1.bf16.msra.mxu0 0
    %411 = vmatprep.subr.bf16.mxu0 0
    %412 = vmatpush1.bf16.msra.mxu0 0
    %413 = vmatprep.subr.bf16.mxu0 0
    %414 = vmatpush1.bf16.msra.mxu0 0
    %415 = vmatprep.subr.bf16.mxu0 0
    %416 = vmatpush1.bf16.msra.mxu0 0
    %417 = vmatprep.subr.bf16.mxu0 0
    %418 = vmatpush1.bf16.msra.mxu0 0
    %419 = vmatprep.subr.bf16.mxu0 0
    %420 = vmatpush1.bf16.msra.mxu0 0
    %421 = vmatprep.subr.bf16.mxu0 0
    %422 = vmatpush1.bf16.msra.mxu0 0
    %423 = vmatprep.subr.bf16.mxu0 0
    %424 = vmatpush1.bf16.msra.mxu0 0
    %425 = vmatprep.subr.bf16.mxu0 0
    %426 = vmatpush1.bf16.msra.mxu0 0
    %427 = vmatprep.mubr.bf16.mxu0 0
    %428 = vmatmul.mubr.bf16.gmra.mrb[0].mxu0 %v387
    %v429 = vpop.f32.mrb[0].mxu0
    %v430 = vadd.f32 0.0, %v429
    %v431 = vpop.f32.mrb[0].mxu0
    %v432 = vpop.f32.mrb[0].mxu0
    %v433 = vadd.f32 0.0, %v432
    %v434 = vpop.f32.mrb[0].mxu0
    %435 = vmatprep.mubr.bf16.mxu0 0
    %436 = vmatmul.mubr.bf16.gmra.mrb[0].mxu0 %v390
    %v437 = vpop.f32.mrb[0].mxu0
    %v438 = vadd.f32 0.0, %v437
    %v439 = vpop.f32.mrb[0].mxu0
    %v440 = vpop.f32.mrb[0].mxu0
    %v441 = vadd.f32 0.0, %v440
    %v442 = vpop.f32.mrb[0].mxu0
    %443 = vdwg.mxu0
    %v444 = vld [vmem:[#allocation2] sm:$0xff]
    %v445 = vld [vmem:[#allocation2 + $0x8] sm:$0xff]
    %v446 = vld [vmem:[#allocation2 + $0x10] sm:$0xff]
    %v447 = vld [vmem:[#allocation2 + $0x18] sm:$0xff]
    %v448 = vadd.f32 %v444, %v430
    %v449 = vadd.f32 %v445, %v433
    %v450 = vadd.f32 %v446, %v438
    %v451 = vadd.f32 %v447, %v441
    %452 = vst [vmem:[#allocation2] sm:$0xff] %v448
    %453 = vst [vmem:[#allocation2 + $0x8] sm:$0xff] %v449
    %454 = vst [vmem:[#allocation2 + $0x10] sm:$0xff] %v450
    %455 = vst [vmem:[#allocation2 + $0x18] sm:$0xff] %v451
    %v456 = vld [vmem:[#allocation2] sm:$0xff]
    %v457 = vld [vmem:[#allocation2 + $0x8] sm:$0xff]
    %v458 = vld [vmem:[#allocation2 + $0x10] sm:$0xff]
    %v459 = vld [vmem:[#allocation2 + $0x18] sm:$0xff]
    %v460 = vpack.c.bf16 %v457, %v456
    %v461 = vpack.c.bf16 %v459, %v458
    %v464 = vunpack.c.l.b16 %v460
    %v465 = vunpack.c.h.b16 %v460
    %v466 = vunpack.c.l.b16 %v461
    %v467 = vunpack.c.h.b16 %v461
    %v468 = vpack.c.b16 %v464, %v464
    %v469 = vpack.c.b16 %v465, %v465
    %v470 = vpack.c.b16 %v466, %v466
    %v471 = vpack.c.b16 %v467, %v467
    %476 = vst [vmem:[#allocation6] sm:$0xf] %v468
    %477 = vst [vmem:[#allocation6 + $0x4] sm:$0xf] %v469
    %478 = vst [vmem:[#allocation6 + $0x8] sm:$0xf] %v470
    %479 = vst [vmem:[#allocation6 + $0xc] sm:$0xf] %v471
    %v480 = vadd.f32 %v456, %v457
    %v481 = vadd.f32 %v480, %v458
    %v482 = vadd.f32 %v481, %v459
    %v483 = vrot.slane %v482, 4
    %v484 = vadd.f32 %v482, %v483
    %v485 = vrot.slane %v484, 2
    %v486 = vadd.f32 %v484, %v485
    %v487 = vrot.slane %v486, 1
    %v488 = vadd.f32 %v486, %v487
    %489 = vst [vmem:[#allocation7] sm:$0x1] %v488
    %v490 = vmul.f32 %v456, %v456
    %v491 = vmul.f32 %v457, %v457
    %v492 = vmul.f32 %v458, %v458
    %v493 = vmul.f32 %v459, %v459
    %v494 = vadd.f32 %v490, %v491
    %v495 = vadd.f32 %v494, %v492
    %v496 = vadd.f32 %v495, %v493
    %v497 = vrot.slane %v496, 4
    %v498 = vadd.f32 %v496, %v497
    %v499 = vrot.slane %v498, 2
    %v500 = vadd.f32 %v498, %v499
    %v501 = vrot.slane %v500, 1
    %v502 = vadd.f32 %v500, %v501
    %503 = vst [vmem:[#allocation7 + $0x1] sm:$0x1] %v502
    // Predicated region
    $region14: #{tpu_custom_call.1} parent=1 // pred_check
      _
    $region15: #{tpu_custom_call.1} parent=1 // pred_check_branch
      %505 = sbr.rel (0) target = $region17
    $region16: #{tpu_custom_call.1} parent=1 // pred_region
      %s507 = ssub.s32 256, 256
      %508 = vsyncadd [#allocation5], %s507
      %s509 = sshll.u32 [#allocation6], 4
      %s510 = int_to_ptr.vmem [resolvable:$true] %s509
      %515 = dma.vmem_to_hbm [thread:$0]  %s510, 256, %s2, [#allocation5], 64, 64, 4
    $region17: #{tpu_custom_call.1} parent=1 // pred_fallthru
      _
    // Predicated region
    $region18: #{tpu_custom_call.1} parent=1 // pred_check
      _
    $region19: #{tpu_custom_call.1} parent=1 // pred_check_branch
      %517 = sbr.rel (0) target = $region21
    $region20: #{tpu_custom_call.1} parent=1 // pred_region
      %s519 = ssub.s32 32, 32
      %520 = vsyncadd [#allocation8], %s519
      %s522 = sshll.u32 [#allocation7], 4
      %s523 = int_to_ptr.vmem [resolvable:$true] %s522
      %525 = dma.vmem_to_hbm [thread:$0]  %s523, 32, %s3, [#allocation8]
    $region21: #{tpu_custom_call.1} parent=1 // pred_fallthru
      _
    // Predicated region
    $region22: #{tpu_custom_call.1} parent=1 // pred_check
      _
    $region23: #{tpu_custom_call.1} parent=1 // pred_check_branch
      %527 = sbr.rel (0) target = $region25
    $region24: #{tpu_custom_call.1} parent=1 // pred_region
      %528 = dma.done [#allocation5], 256
    $region25: #{tpu_custom_call.1} parent=1 // pred_fallthru
      _
    // Predicated region
    $region26: #{tpu_custom_call.1} parent=1 // pred_check
      _
    $region27: #{tpu_custom_call.1} parent=1 // pred_check_branch
      %530 = sbr.rel (0) target = $region29
    $region28: #{tpu_custom_call.1} parent=1 // pred_region
      %531 = dma.done [#allocation8], 32
    $region29: #{tpu_custom_call.1} parent=1 // pred_fallthru
      _
    %532 = vsyncpa [#allocation4], 1
    %533 = vsyncpa [#allocation5], 1
    %534 = vsyncpa [#allocation8], 1

</llo_original>
